<compile_context>
chip_gen: v7x
topology: tpu7x:2x2x1
jax: 0.10.0
libtpu: 0.0.40
codegen_flags: <defaults>
</compile_context>

<pallas_src>
import functools

import jax
import jax.numpy as jnp
from jax.experimental import pallas as pl
from jax.experimental.pallas import tpu as pltpu

H1 = 64    # dense1 width (logical)
H2 = 128   # dense2 width
H3 = 64    # dense3 / output width
HP = 128   # lane-padded internal width for dense1 out / dense2 in


def _round_up(n, m):
    return ((n + m - 1) // m) * m


def _mlp_kernel(x_ref, w1_ref, b1_ref, w2_ref, b2_ref, w3_ref, b3_ref, o_ref):
    # dense1: Linear(in_features, 64 -> 128 padded) + ReLU.  x is already bf16.
    h = jnp.dot(x_ref[...], w1_ref[...], preferred_element_type=jnp.float32)
    h = jnp.maximum(h + b1_ref[...], 0.0).astype(jnp.bfloat16)   # bf16 intermediate
    # dense2: Linear(128 padded, 128) + ReLU
    h = jnp.dot(h, w2_ref[...], preferred_element_type=jnp.float32)
    h = jnp.maximum(h + b2_ref[...], 0.0).astype(jnp.bfloat16)   # bf16 intermediate
    # dense3: Linear(128, 64) + ReLU  (true 64-wide output, no padded columns)
    h = jnp.dot(h, w3_ref[...], preferred_element_type=jnp.float32)
    h = jnp.maximum(h + b3_ref[...], 0.0)
    # dropout(p=0.1) in eval mode == identity.
    o_ref[...] = h.astype(o_ref.dtype)


def prepare_params(params, matmul_dtype=jnp.bfloat16):
    """One-time prep: zero-pad the 64-wide internal dims to 128, cast W to bf16."""
    w1, b1, w2, b2, w3, b3 = params
    # W1: (in_features, 64) -> (in_features, 128); padded cols are exact zeros.
    w1p = jnp.pad(w1, ((0, 0), (0, HP - w1.shape[1]))).astype(matmul_dtype)
    b1p = jnp.pad(b1, (0, HP - b1.shape[0])).astype(jnp.float32).reshape(1, HP)
    # W2: (64, 128) -> (128, 128); padded K-rows multiply the zero columns above.
    w2p = jnp.pad(w2, ((0, HP - w2.shape[0]), (0, 0))).astype(matmul_dtype)
    b2p = b2.astype(jnp.float32).reshape(1, H2)
    # W3: (128, 64) unpadded -> output is written at its true width.
    w3p = w3.astype(matmul_dtype)
    b3p = b3.astype(jnp.float32).reshape(1, H3)
    return (w1p, b1p, w2p, b2p, w3p, b3p)


@functools.partial(jax.jit, static_argnames=("tile_b",))
def deep_layer_forward(x, prepared_params, *, tile_b=1024):
    """x: (..., in_features) -> (..., 64). Hot path is a single fused Pallas kernel."""
    w1, b1, w2, b2, w3, b3 = prepared_params
    in_features = x.shape[-1]
    lead_shape = x.shape[:-1]
    out_dtype = x.dtype

    x2d = x.reshape(-1, in_features)
    batch = x2d.shape[0]

    # bf16 input halves input-side HBM traffic; matmul numerics unchanged
    # (operands were cast to bf16 anyway, accumulation stays f32).
    x2d = x2d.astype(jnp.bfloat16)

    # Batch tiling: 16-row alignment (bf16 sublanes).  For large batches cap the
    # tile at half the batch so the grid has >= 2 "parallel" steps and both v7x
    # TensorCores are used; harmless (sequential) on v5e/v6e.
    batch_r = _round_up(batch, 16)
    half = _round_up(pl.cdiv(batch_r, 2), 16)
    if half >= 256:
        tile_eff = min(tile_b, half)
    else:
        tile_eff = min(tile_b, batch_r)
    tile_eff = _round_up(tile_eff, 16)
    batch_padded = _round_up(batch, tile_eff)
    if batch_padded != batch:
        x2d = jnp.pad(x2d, ((0, batch_padded - batch), (0, 0)))

    grid = (batch_padded // tile_eff,)

    flops = 2 * batch_padded * (in_features * HP + HP * HP + HP * H3)
    bytes_accessed = (
        batch_padded * in_features * 2                          # bf16 x read
        + batch_padded * H3 * jnp.dtype(out_dtype).itemsize     # out write
        + sum(int(p.size) * p.dtype.itemsize
              for p in (w1, b1, w2, b2, w3, b3))                # resident weights
    )

    out = pl.pallas_call(
        _mlp_kernel,
        out_shape=jax.ShapeDtypeStruct((batch_padded, H3), out_dtype),
        grid_spec=pltpu.PrefetchScalarGridSpec(
            num_scalar_prefetch=0,
            grid=grid,
            in_specs=[
                # NOTE: on v5e, if profiling shows exposed x/out DMA at large
                # tiles, add pipeline_mode=pl.Buffered(3) to the x/out specs.
                pl.BlockSpec((tile_eff, in_features), lambda i: (i, 0)),  # x tile
                pl.BlockSpec((in_features, HP), lambda i: (0, 0)),        # W1 (resident)
                pl.BlockSpec((1, HP), lambda i: (0, 0)),                  # b1
                pl.BlockSpec((HP, HP), lambda i: (0, 0)),                 # W2
                pl.BlockSpec((1, HP), lambda i: (0, 0)),                  # b2
                pl.BlockSpec((HP, H3), lambda i: (0, 0)),                 # W3
                pl.BlockSpec((1, H3), lambda i: (0, 0)),                  # b3
            ],
            out_specs=pl.BlockSpec((tile_eff, H3), lambda i: (i, 0)),
        ),
        compiler_params=pltpu.CompilerParams(
            dimension_semantics=("parallel",),   # megacore-shardable batch loop
            vmem_limit_bytes=32 << 20,           # explicit; working set is ~few MiB
        ),
        cost_estimate=pl.CostEstimate(
            flops=flops, transcendentals=0, bytes_accessed=bytes_accessed),
    )(x2d, w1, b1, w2, b2, w3, b3)

    if batch_padded != batch:
        out = out[:batch]
    return out.reshape(*lead_shape, H3)


def init_params(key, in_features, dtype=jnp.float32):
    """Deterministic synthetic init (PyTorch-Linear-like uniform bounds)."""
    ks = jax.random.split(key, 6)

    def lin(kw, kb, fan_in, fan_out):
        bound = 1.0 / jnp.sqrt(jnp.asarray(fan_in, jnp.float32))
        w = jax.random.uniform(kw, (fan_in, fan_out), dtype, -bound, bound)
        b = jax.random.uniform(kb, (fan_out,), dtype, -bound, bound)
        return w, b

    w1, b1 = lin(ks[0], ks[1], in_features, H1)
    w2, b2 = lin(ks[2], ks[3], H1, H2)
    w3, b3 = lin(ks[4], ks[5], H2, H3)
    return (w1, b1, w2, b2, w3, b3)


def _reference(x, params):
    """Pure-JAX reference mirroring the kernel's bf16-operand / f32-accum math."""
    w1, b1, w2, b2, w3, b3 = params
    h = x.astype(jnp.bfloat16)
    y = None
    for (w, b) in ((w1, b1), (w2, b2), (w3, b3)):
        y = jnp.dot(h, w.astype(jnp.bfloat16), preferred_element_type=jnp.float32)
        y = jnp.maximum(y + b.astype(jnp.float32), 0.0)
        h = y.astype(jnp.bfloat16)
    return y  # final layer output stays f32 (matches kernel epilogue/store)


if __name__ == "__main__":
    key = jax.random.PRNGKey(0)
    k_x, k_p = jax.random.split(key)

    in_features = 32
    batch = 16
    x = jax.random.normal(k_x, (batch, in_features), jnp.float32)
    params = init_params(k_p, in_features)
    prepared = prepare_params(params)           # pad + bf16-cast once, outside jit

    out = deep_layer_forward(x, prepared)
    out = jax.block_until_ready(out)

    ref = _reference(x, params)
    assert out.shape == (batch, H3), out.shape
    max_err = float(jnp.max(jnp.abs(out - ref)))
    assert jnp.allclose(out, ref, atol=1e-2, rtol=1e-2), f"mismatch vs reference: {max_err}"

    print("KERNEL_OK")
</pallas_src>

<mosaic_0001>
module attributes {stable_mosaic.version = 11 : i64} {
  func.func @_mlp_kernel(%arg0: i32, %arg1: memref<16x32xbf16, #tpu.memory_space<vmem>>, %arg2: memref<32x128xbf16, #tpu.memory_space<vmem>>, %arg3: memref<1x128xf32, #tpu.memory_space<vmem>>, %arg4: memref<128x128xbf16, #tpu.memory_space<vmem>>, %arg5: memref<1x128xf32, #tpu.memory_space<vmem>>, %arg6: memref<128x64xbf16, #tpu.memory_space<vmem>>, %arg7: memref<1x64xf32, #tpu.memory_space<vmem>>, %arg8: memref<16x64xf32, #tpu.memory_space<vmem>>) attributes {dimension_semantics = [#tpu.dimension_semantics<parallel>], iteration_bounds = array<i64: 1>, scalar_prefetch = 0 : i64, scratch_operands = 0 : i64, tpu.core_type = #tpu.core_type<tc>, window_params = [{transform_indices = @transform_0, window_bounds = array<i64: 16, 32>}, {pipeline_mode = #tpu.pipeline_mode<synchronous>, transform_indices = @transform_1, window_bounds = array<i64: 32, 128>}, {pipeline_mode = #tpu.pipeline_mode<synchronous>, transform_indices = @transform_2, window_bounds = array<i64: 1, 128>}, {pipeline_mode = #tpu.pipeline_mode<synchronous>, transform_indices = @transform_3, window_bounds = array<i64: 128, 128>}, {pipeline_mode = #tpu.pipeline_mode<synchronous>, transform_indices = @transform_4, window_bounds = array<i64: 1, 128>}, {pipeline_mode = #tpu.pipeline_mode<synchronous>, transform_indices = @transform_5, window_bounds = array<i64: 128, 64>}, {pipeline_mode = #tpu.pipeline_mode<synchronous>, transform_indices = @transform_6, window_bounds = array<i64: 1, 64>}, {transform_indices = @transform_7, window_bounds = array<i64: 16, 64>}]} {
    %c0 = arith.constant 0 : index
    %c0_0 = arith.constant 0 : index
    %0 = vector.load %arg1[%c0, %c0_0] : memref<16x32xbf16, #tpu.memory_space<vmem>>, vector<16x32xbf16>
    %c0_1 = arith.constant 0 : index
    %c0_2 = arith.constant 0 : index
    %1 = vector.load %arg2[%c0_1, %c0_2] : memref<32x128xbf16, #tpu.memory_space<vmem>>, vector<32x128xbf16>
    %cst = arith.constant dense<0.000000e+00> : vector<16x128xf32>
    %2 = tpu.matmul %0, %1, %cst {dimension_numbers = #tpu.dot_dimension_numbers<[1], [0], [0], [1], [0, 0, 1, 1], [], []>} : vector<16x32xbf16>, vector<32x128xbf16>, vector<16x128xf32> -> vector<16x128xf32>
    %c0_3 = arith.constant 0 : index
    %c0_4 = arith.constant 0 : index
    %3 = vector.load %arg3[%c0_3, %c0_4] : memref<1x128xf32, #tpu.memory_space<vmem>>, vector<1x128xf32>
    %4 = vector.broadcast %3 : vector<1x128xf32> to vector<16x128xf32>
    %5 = arith.addf %2, %4 : vector<16x128xf32>
    %cst_5 = arith.constant 0.000000e+00 : f32
    %6 = vector.broadcast %cst_5 : f32 to vector<16x128xf32>
    %7 = arith.maximumf %5, %6 : vector<16x128xf32>
    %8 = arith.truncf %7 : vector<16x128xf32> to vector<16x128xbf16>
    %c0_6 = arith.constant 0 : index
    %c0_7 = arith.constant 0 : index
    %9 = vector.load %arg4[%c0_6, %c0_7] : memref<128x128xbf16, #tpu.memory_space<vmem>>, vector<128x128xbf16>
    %cst_8 = arith.constant dense<0.000000e+00> : vector<16x128xf32>
    %10 = tpu.matmul %8, %9, %cst_8 {dimension_numbers = #tpu.dot_dimension_numbers<[1], [0], [0], [1], [0, 0, 1, 1], [], []>} : vector<16x128xbf16>, vector<128x128xbf16>, vector<16x128xf32> -> vector<16x128xf32>
    %c0_9 = arith.constant 0 : index
    %c0_10 = arith.constant 0 : index
    %11 = vector.load %arg5[%c0_9, %c0_10] : memref<1x128xf32, #tpu.memory_space<vmem>>, vector<1x128xf32>
    %12 = vector.broadcast %11 : vector<1x128xf32> to vector<16x128xf32>
    %13 = arith.addf %10, %12 : vector<16x128xf32>
    %cst_11 = arith.constant 0.000000e+00 : f32
    %14 = vector.broadcast %cst_11 : f32 to vector<16x128xf32>
    %15 = arith.maximumf %13, %14 : vector<16x128xf32>
    %16 = arith.truncf %15 : vector<16x128xf32> to vector<16x128xbf16>
    %c0_12 = arith.constant 0 : index
    %c0_13 = arith.constant 0 : index
    %17 = vector.load %arg6[%c0_12, %c0_13] : memref<128x64xbf16, #tpu.memory_space<vmem>>, vector<128x64xbf16>
    %cst_14 = arith.constant dense<0.000000e+00> : vector<16x64xf32>
    %18 = tpu.matmul %16, %17, %cst_14 {dimension_numbers = #tpu.dot_dimension_numbers<[1], [0], [0], [1], [0, 0, 1, 1], [], []>} : vector<16x128xbf16>, vector<128x64xbf16>, vector<16x64xf32> -> vector<16x64xf32>
    %c0_15 = arith.constant 0 : index
    %c0_16 = arith.constant 0 : index
    %19 = vector.load %arg7[%c0_15, %c0_16] : memref<1x64xf32, #tpu.memory_space<vmem>>, vector<1x64xf32>
    %20 = vector.broadcast %19 : vector<1x64xf32> to vector<16x64xf32>
    %21 = arith.addf %18, %20 : vector<16x64xf32>
    %cst_17 = arith.constant 0.000000e+00 : f32
    %22 = vector.broadcast %cst_17 : f32 to vector<16x64xf32>
    %23 = arith.maximumf %21, %22 : vector<16x64xf32>
    %c0_18 = arith.constant 0 : index
    %c0_19 = arith.constant 0 : index
    %24 = vector.load %arg8[%c0_18, %c0_19] : memref<16x64xf32, #tpu.memory_space<vmem>>, vector<16x64xf32>
    tpu.vector_store %arg8[%c0_18, %c0_19], %23 {strides = array<i32>} : memref<16x64xf32, #tpu.memory_space<vmem>>, vector<16x64xf32>,
    return
  }
  func.func @transform_0(%arg0: i32) -> (i32, i32) {
    %c0_i32 = arith.constant 0 : i32
    %c0_i32_0 = arith.constant 0 : i32
    return %arg0, %c0_i32 : i32, i32
  }
  func.func @transform_1(%arg0: i32) -> (i32, i32) {
    %c0_i32 = arith.constant 0 : i32
    %c0_i32_0 = arith.constant 0 : i32
    %c0_i32_1 = arith.constant 0 : i32
    return %c0_i32, %c0_i32_0 : i32, i32
  }
  func.func @transform_2(%arg0: i32) -> (i32, i32) {
    %c0_i32 = arith.constant 0 : i32
    %c0_i32_0 = arith.constant 0 : i32
    %c0_i32_1 = arith.constant 0 : i32
    return %c0_i32, %c0_i32_0 : i32, i32
  }
  func.func @transform_3(%arg0: i32) -> (i32, i32) {
    %c0_i32 = arith.constant 0 : i32
    %c0_i32_0 = arith.constant 0 : i32
    %c0_i32_1 = arith.constant 0 : i32
    return %c0_i32, %c0_i32_0 : i32, i32
  }
  func.func @transform_4(%arg0: i32) -> (i32, i32) {
    %c0_i32 = arith.constant 0 : i32
    %c0_i32_0 = arith.constant 0 : i32
    %c0_i32_1 = arith.constant 0 : i32
    return %c0_i32, %c0_i32_0 : i32, i32
  }
  func.func @transform_5(%arg0: i32) -> (i32, i32) {
    %c0_i32 = arith.constant 0 : i32
    %c0_i32_0 = arith.constant 0 : i32
    %c0_i32_1 = arith.constant 0 : i32
    return %c0_i32, %c0_i32_0 : i32, i32
  }
  func.func @transform_6(%arg0: i32) -> (i32, i32) {
    %c0_i32 = arith.constant 0 : i32
    %c0_i32_0 = arith.constant 0 : i32
    %c0_i32_1 = arith.constant 0 : i32
    return %c0_i32, %c0_i32_0 : i32, i32
  }
  func.func @transform_7(%arg0: i32) -> (i32, i32) {
    %c0_i32 = arith.constant 0 : i32
    %c0_i32_0 = arith.constant 0 : i32
    return %arg0, %c0_i32 : i32, i32
  }
}

</mosaic_0001>

<llo_original>
// kernel: deep_layer_forward.1
$region0: #{deep_layer_forward.1}
  #allocation0 [shape = 'u32[]', space=smem, size = 0x4, offset = 0x4, fixed_abs, tag = 'smem constant byte address 0x4 - core index']
  #allocation1 [shape = 'u32[144,128]{1,0:T(1,128)}', space=vmem, size = 0x12000, scoped, tag = 'internal scratch']
  %s0 = inlined_call_operand.vmem [shape: bf16[16,32], index: 0, kind: input, shape index: {}]
  %s1 = inlined_call_operand.vmem [shape: bf16[32,128], index: 1, kind: input, shape index: {}]
  %s2 = inlined_call_operand.vmem [shape: f32[1,128], index: 2, kind: input, shape index: {}]
  %s3 = inlined_call_operand.vmem [shape: bf16[128,128], index: 3, kind: input, shape index: {}]
  %s4 = inlined_call_operand.vmem [shape: f32[1,128], index: 4, kind: input, shape index: {}]
  %s5 = inlined_call_operand.vmem [shape: bf16[128,64], index: 5, kind: input, shape index: {}]
  %s6 = inlined_call_operand.vmem [shape: f32[1,64], index: 6, kind: input, shape index: {}]
  %s7 = inlined_call_operand.hbm [shape: f32[16,64], index: 7, kind: output, shape index: {}]
  %s8 = sld [smem:[#allocation0]]
  $region38: #{deep_layer_forward.1} parent=0
    _
  %s10 = ssub.s32 1, %s8
  %s11 = scalar_select 0, %s10, %s8
  $region1: #{deep_layer_forward.1} parent=0
    #allocation2 [shape = 'u8[8192]{0}', space=vmem, size = 0x2000, scoped, tag = 'output window, operand 0, single buffered']
    #allocation3 [shape = 's32[1]{0}', space=sflag, size = 0x4, scoped, tag = 'scoped memory for deep_layer_forward.1']
    %12 = vsyncpa [#allocation3], 0
    // Predicated region
    $region2: #{deep_layer_forward.1} parent=1 // pred_check
      _
    $region3: #{deep_layer_forward.1} parent=1 // pred_check_branch
      %14 = sbr.rel (0) target = $region5
    $region4: #{deep_layer_forward.1} parent=1 // pred_region
      _
    $region5: #{deep_layer_forward.1} parent=1 // pred_fallthru
      _
    // Predicated region
    $region6: #{deep_layer_forward.1} parent=1 // pred_check
      _
    $region7: #{deep_layer_forward.1} parent=1 // pred_check_branch
      %16 = sbr.rel (0) target = $region9
    $region8: #{deep_layer_forward.1} parent=1 // pred_region
      _
    $region9: #{deep_layer_forward.1} parent=1 // pred_fallthru
      _
    // Predicated region
    $region10: #{deep_layer_forward.1} parent=1 // pred_check
      _
    $region11: #{deep_layer_forward.1} parent=1 // pred_check_branch
      %18 = sbr.rel (0) target = $region13
    $region12: #{deep_layer_forward.1} parent=1 // pred_region
      _
    $region13: #{deep_layer_forward.1} parent=1 // pred_fallthru
      _
    // Predicated region
    $region14: #{deep_layer_forward.1} parent=1 // pred_check
      _
    $region15: #{deep_layer_forward.1} parent=1 // pred_check_branch
      %20 = sbr.rel (0) target = $region17
    $region16: #{deep_layer_forward.1} parent=1 // pred_region
      _
    $region17: #{deep_layer_forward.1} parent=1 // pred_fallthru
      _
    // Predicated region
    $region18: #{deep_layer_forward.1} parent=1 // pred_check
      _
    $region19: #{deep_layer_forward.1} parent=1 // pred_check_branch
      %22 = sbr.rel (0) target = $region21
    $region20: #{deep_layer_forward.1} parent=1 // pred_region
      _
    $region21: #{deep_layer_forward.1} parent=1 // pred_fallthru
      _
    // Predicated region
    $region22: #{deep_layer_forward.1} parent=1 // pred_check
      _
    $region23: #{deep_layer_forward.1} parent=1 // pred_check_branch
      %24 = sbr.rel (0) target = $region25
    $region24: #{deep_layer_forward.1} parent=1 // pred_region
      _
    $region25: #{deep_layer_forward.1} parent=1 // pred_fallthru
      _
    // Predicated region
    $region26: #{deep_layer_forward.1} parent=1 // pred_check
      _
    $region27: #{deep_layer_forward.1} parent=1 // pred_check_branch
      %26 = sbr.rel (0) target = $region29
    $region28: #{deep_layer_forward.1} parent=1 // pred_region
      _
    $region29: #{deep_layer_forward.1} parent=1 // pred_fallthru
      _
    %v28 = vld [vmem:[%s0] sm:$0xf]
    %v29 = vld [vmem:[%s0 + $0x4] sm:$0xf]
    %v30 = vld [vmem:[%s1] sm:$0xf]
    %v31 = vld [vmem:[%s1 + $0x4] sm:$0xf]
    %v32 = vld [vmem:[%s1 + $0x8] sm:$0xf]
    %v33 = vld [vmem:[%s1 + $0xc] sm:$0xf]
    %v34 = vld [vmem:[%s2] sm:$0x1]
    %v36 = vlaneseq
    %v37 = vshrl.u32 %v36, 7
    %v38 = vsub.s32 0, %v37
    %v39 = vrot.slane %v34, %v38
    %v43 = vunpack.c.l.b16 %v28
    %v44 = vunpack.c.l.b16 %v29
    %v45 = vpack.c.b16 %v44, %v43
    %v50 = vunpack.c.l.b16 %v30
    %v51 = vunpack.c.l.b16 %v31
    %v52 = vunpack.c.l.b16 %v32
    %v53 = vunpack.c.l.b16 %v33
    %v54 = vpack.c.b16 %v51, %v50
    %v55 = vpack.c.b16 %v53, %v52
    %vm58 = vcmask 261120
    %v60 = vsel %vm58, %v45, 0
    %62 = vmatprep.subr.bf16.mxu0 0
    %63 = vmatpush1.bf16.msra.mxu0 %v54
    %64 = vmatprep.subr.bf16.mxu0 0
    %65 = vmatpush1.bf16.msra.mxu0 %v55
    %66 = vmatprep.subr.bf16.mxu0 0
    %67 = vmatpush1.bf16.msra.mxu0 0
    %68 = vmatprep.subr.bf16.mxu0 0
    %69 = vmatpush1.bf16.msra.mxu0 0
    %70 = vmatprep.subr.bf16.mxu0 0
    %71 = vmatpush1.bf16.msra.mxu0 0
    %72 = vmatprep.subr.bf16.mxu0 0
    %73 = vmatpush1.bf16.msra.mxu0 0
    %74 = vmatprep.subr.bf16.mxu0 0
    %75 = vmatpush1.bf16.msra.mxu0 0
    %76 = vmatprep.subr.bf16.mxu0 0
    %77 = vmatpush1.bf16.msra.mxu0 0
    %78 = vmatprep.subr.bf16.mxu0 0
    %79 = vmatpush1.bf16.msra.mxu0 0
    %80 = vmatprep.subr.bf16.mxu0 0
    %81 = vmatpush1.bf16.msra.mxu0 0
    %82 = vmatprep.subr.bf16.mxu0 0
    %83 = vmatpush1.bf16.msra.mxu0 0
    %84 = vmatprep.subr.bf16.mxu0 0
    %85 = vmatpush1.bf16.msra.mxu0 0
    %86 = vmatprep.subr.bf16.mxu0 0
    %87 = vmatpush1.bf16.msra.mxu0 0
    %88 = vmatprep.subr.bf16.mxu0 0
    %89 = vmatpush1.bf16.msra.mxu0 0
    %90 = vmatprep.subr.bf16.mxu0 0
    %91 = vmatpush1.bf16.msra.mxu0 0
    %92 = vmatprep.subr.bf16.mxu0 0
    %93 = vmatpush1.bf16.msra.mxu0 0
    %94 = vmatprep.mubr.bf16.mxu0 0
    %95 = vmatmul.mubr.bf16.gmra.mrb[0].mxu0 %v60
    %v96 = vpop.f32.mrb[0].mxu0
    %v97 = vadd.f32 %v39, %v96
    %v98 = vpop.f32.mrb[0].mxu0
    %v99 = vpop.f32.mrb[0].mxu0
    %v100 = vadd.f32 %v39, %v99
    %v101 = vpop.f32.mrb[0].mxu0
    %102 = vdwg.mxu0
    %v103 = vmax.f32 %v97, 0.0
    %v104 = vmax.f32 %v100, 0.0
    %v105 = vpack.c.bf16 %v104, %v103
    %v106 = vld [vmem:[%s3] sm:$0xf]
    %v107 = vld [vmem:[%s3 + $0x4] sm:$0xf]
    %v108 = vld [vmem:[%s3 + $0x8] sm:$0xf]
    %v109 = vld [vmem:[%s3 + $0xc] sm:$0xf]
    %v110 = vld [vmem:[%s3 + $0x10] sm:$0xf]
    %v111 = vld [vmem:[%s3 + $0x14] sm:$0xf]
    %v112 = vld [vmem:[%s3 + $0x18] sm:$0xf]
    %v113 = vld [vmem:[%s3 + $0x1c] sm:$0xf]
    %v114 = vld [vmem:[%s3 + $0x20] sm:$0xf]
    %v115 = vld [vmem:[%s3 + $0x24] sm:$0xf]
    %v116 = vld [vmem:[%s3 + $0x28] sm:$0xf]
    %v117 = vld [vmem:[%s3 + $0x2c] sm:$0xf]
    %v118 = vld [vmem:[%s3 + $0x30] sm:$0xf]
    %v119 = vld [vmem:[%s3 + $0x34] sm:$0xf]
    %v120 = vld [vmem:[%s3 + $0x38] sm:$0xf]
    %v121 = vld [vmem:[%s3 + $0x3c] sm:$0xf]
    %v122 = vld [vmem:[%s4] sm:$0x1]
    %v124 = vlaneseq
    %v125 = vshrl.u32 %v124, 7
    %v126 = vsub.s32 0, %v125
    %v127 = vrot.slane %v122, %v126
    %v145 = vunpack.c.l.b16 %v106
    %v146 = vunpack.c.l.b16 %v107
    %v147 = vunpack.c.l.b16 %v108
    %v148 = vunpack.c.l.b16 %v109
    %v149 = vunpack.c.l.b16 %v110
    %v150 = vunpack.c.l.b16 %v111
    %v151 = vunpack.c.l.b16 %v112
    %v152 = vunpack.c.l.b16 %v113
    %v153 = vunpack.c.l.b16 %v114
    %v154 = vunpack.c.l.b16 %v115
    %v155 = vunpack.c.l.b16 %v116
    %v156 = vunpack.c.l.b16 %v117
    %v157 = vunpack.c.l.b16 %v118
    %v158 = vunpack.c.l.b16 %v119
    %v159 = vunpack.c.l.b16 %v120
    %v160 = vunpack.c.l.b16 %v121
    %v161 = vpack.c.b16 %v146, %v145
    %v162 = vpack.c.b16 %v148, %v147
    %v163 = vpack.c.b16 %v150, %v149
    %v164 = vpack.c.b16 %v152, %v151
    %v165 = vpack.c.b16 %v154, %v153
    %v166 = vpack.c.b16 %v156, %v155
    %v167 = vpack.c.b16 %v158, %v157
    %v168 = vpack.c.b16 %v160, %v159
    %177 = vmatprep.subr.bf16.mxu0 0
    %178 = vmatpush1.bf16.msra.mxu0 %v161
    %179 = vmatprep.subr.bf16.mxu0 0
    %180 = vmatpush1.bf16.msra.mxu0 %v162
    %181 = vmatprep.subr.bf16.mxu0 0
    %182 = vmatpush1.bf16.msra.mxu0 %v163
    %183 = vmatprep.subr.bf16.mxu0 0
    %184 = vmatpush1.bf16.msra.mxu0 %v164
    %185 = vmatprep.subr.bf16.mxu0 0
    %186 = vmatpush1.bf16.msra.mxu0 %v165
    %187 = vmatprep.subr.bf16.mxu0 0
    %188 = vmatpush1.bf16.msra.mxu0 %v166
    %189 = vmatprep.subr.bf16.mxu0 0
    %190 = vmatpush1.bf16.msra.mxu0 %v167
    %191 = vmatprep.subr.bf16.mxu0 0
    %192 = vmatpush1.bf16.msra.mxu0 %v168
    %193 = vmatprep.subr.bf16.mxu0 0
    %194 = vmatpush1.bf16.msra.mxu0 0
    %195 = vmatprep.subr.bf16.mxu0 0
    %196 = vmatpush1.bf16.msra.mxu0 0
    %197 = vmatprep.subr.bf16.mxu0 0
    %198 = vmatpush1.bf16.msra.mxu0 0
    %199 = vmatprep.subr.bf16.mxu0 0
    %200 = vmatpush1.bf16.msra.mxu0 0
    %201 = vmatprep.subr.bf16.mxu0 0
    %202 = vmatpush1.bf16.msra.mxu0 0
    %203 = vmatprep.subr.bf16.mxu0 0
    %204 = vmatpush1.bf16.msra.mxu0 0
    %205 = vmatprep.subr.bf16.mxu0 0
    %206 = vmatpush1.bf16.msra.mxu0 0
    %207 = vmatprep.subr.bf16.mxu0 0
    %208 = vmatpush1.bf16.msra.mxu0 0
    %209 = vmatprep.mubr.bf16.mxu0 0
    %210 = vmatmul.mubr.bf16.gmra.mrb[0].mxu0 %v105
    %v211 = vpop.f32.mrb[0].mxu0
    %v212 = vadd.f32 %v127, %v211
    %v213 = vpop.f32.mrb[0].mxu0
    %v214 = vpop.f32.mrb[0].mxu0
    %v215 = vadd.f32 %v127, %v214
    %v216 = vpop.f32.mrb[0].mxu0
    %217 = vdwg.mxu0
    %v218 = vmax.f32 %v212, 0.0
    %v219 = vmax.f32 %v215, 0.0
    %v220 = vpack.c.bf16 %v219, %v218
    %v221 = vld [vmem:[%s5] sm:$0xf]
    %v222 = vld [vmem:[%s5 + $0x4] sm:$0xf]
    %v223 = vld [vmem:[%s5 + $0x8] sm:$0xf]
    %v224 = vld [vmem:[%s5 + $0xc] sm:$0xf]
    %v225 = vld [vmem:[%s5 + $0x10] sm:$0xf]
    %v226 = vld [vmem:[%s5 + $0x14] sm:$0xf]
    %v227 = vld [vmem:[%s5 + $0x18] sm:$0xf]
    %v228 = vld [vmem:[%s5 + $0x1c] sm:$0xf]
    %v229 = vld [vmem:[%s5 + $0x20] sm:$0xf]
    %v230 = vld [vmem:[%s5 + $0x24] sm:$0xf]
    %v231 = vld [vmem:[%s5 + $0x28] sm:$0xf]
    %v232 = vld [vmem:[%s5 + $0x2c] sm:$0xf]
    %v233 = vld [vmem:[%s5 + $0x30] sm:$0xf]
    %v234 = vld [vmem:[%s5 + $0x34] sm:$0xf]
    %v235 = vld [vmem:[%s5 + $0x38] sm:$0xf]
    %v236 = vld [vmem:[%s5 + $0x3c] sm:$0xf]
    %v237 = vld [vmem:[%s6] sm:$0x1]
    %v239 = vlaneseq
    %v240 = vshrl.u32 %v239, 7
    %v241 = vsub.s32 0, %v240
    %v242 = vrot.slane %v237, %v241
    %v260 = vunpack.c.l.b16 %v221
    %v261 = vunpack.c.l.b16 %v222
    %v262 = vunpack.c.l.b16 %v223
    %v263 = vunpack.c.l.b16 %v224
    %v264 = vunpack.c.l.b16 %v225
    %v265 = vunpack.c.l.b16 %v226
    %v266 = vunpack.c.l.b16 %v227
    %v267 = vunpack.c.l.b16 %v228
    %v268 = vunpack.c.l.b16 %v229
    %v269 = vunpack.c.l.b16 %v230
    %v270 = vunpack.c.l.b16 %v231
    %v271 = vunpack.c.l.b16 %v232
    %v272 = vunpack.c.l.b16 %v233
    %v273 = vunpack.c.l.b16 %v234
    %v274 = vunpack.c.l.b16 %v235
    %v275 = vunpack.c.l.b16 %v236
    %v276 = vpack.c.b16 %v261, %v260
    %v277 = vpack.c.b16 %v263, %v262
    %v278 = vpack.c.b16 %v265, %v264
    %v279 = vpack.c.b16 %v267, %v266
    %v280 = vpack.c.b16 %v269, %v268
    %v281 = vpack.c.b16 %v271, %v270
    %v282 = vpack.c.b16 %v273, %v272
    %v283 = vpack.c.b16 %v275, %v274
    %292 = vmatprep.subr.bf16.mxu0 0
    %293 = vmatpush1.bf16.msra.mxu0 %v276
    %294 = vmatprep.subr.bf16.mxu0 0
    %295 = vmatpush1.bf16.msra.mxu0 %v277
    %296 = vmatprep.subr.bf16.mxu0 0
    %297 = vmatpush1.bf16.msra.mxu0 %v278
    %298 = vmatprep.subr.bf16.mxu0 0
    %299 = vmatpush1.bf16.msra.mxu0 %v279
    %300 = vmatprep.subr.bf16.mxu0 0
    %301 = vmatpush1.bf16.msra.mxu0 %v280
    %302 = vmatprep.subr.bf16.mxu0 0
    %303 = vmatpush1.bf16.msra.mxu0 %v281
    %304 = vmatprep.subr.bf16.mxu0 0
    %305 = vmatpush1.bf16.msra.mxu0 %v282
    %306 = vmatprep.subr.bf16.mxu0 0
    %307 = vmatpush1.bf16.msra.mxu0 %v283
    %308 = vmatprep.subr.bf16.mxu0 0
    %309 = vmatpush1.bf16.msra.mxu0 0
    %310 = vmatprep.subr.bf16.mxu0 0
    %311 = vmatpush1.bf16.msra.mxu0 0
    %312 = vmatprep.subr.bf16.mxu0 0
    %313 = vmatpush1.bf16.msra.mxu0 0
    %314 = vmatprep.subr.bf16.mxu0 0
    %315 = vmatpush1.bf16.msra.mxu0 0
    %316 = vmatprep.subr.bf16.mxu0 0
    %317 = vmatpush1.bf16.msra.mxu0 0
    %318 = vmatprep.subr.bf16.mxu0 0
    %319 = vmatpush1.bf16.msra.mxu0 0
    %320 = vmatprep.subr.bf16.mxu0 0
    %321 = vmatpush1.bf16.msra.mxu0 0
    %322 = vmatprep.subr.bf16.mxu0 0
    %323 = vmatpush1.bf16.msra.mxu0 0
    %324 = vmatprep.mubr.bf16.mxu0 0
    %325 = vmatmul.mubr.bf16.gmra.mrb[0].mxu0 %v220
    %v326 = vpop.f32.mrb[0].mxu0
    %v327 = vadd.f32 %v242, %v326
    %v328 = vpop.f32.mrb[0].mxu0
    %v329 = vpop.f32.mrb[0].mxu0
    %v330 = vadd.f32 %v242, %v329
    %v331 = vpop.f32.mrb[0].mxu0
    %332 = vdwg.mxu0
    %v333 = vmax.f32 %v327, 0.0
    %v334 = vmax.f32 %v330, 0.0
    %vm335 = vcmask 523264
    %336 = vst.msk [vmem:[#allocation2] sm:$0xff] %vm335, %v333
    %337 = vst.msk [vmem:[#allocation2 + $0x8] sm:$0xff] %vm335, %v334
    // Predicated region
    $region30: #{deep_layer_forward.1} parent=1 // pred_check
      _
    $region31: #{deep_layer_forward.1} parent=1 // pred_check_branch
      %339 = sbr.rel (0) target = $region33
    $region32: #{deep_layer_forward.1} parent=1 // pred_region
      %s341 = ssub.s32 256, 256
      %342 = vsyncadd [#allocation3], %s341
      %s343 = sshll.u32 [#allocation2], 4
      %s344 = int_to_ptr.vmem [resolvable:$true] %s343
      %349 = dma.vmem_to_hbm [thread:$0]  %s344, 256, %s7, [#allocation3], 128, 128, 8
    $region33: #{deep_layer_forward.1} parent=1 // pred_fallthru
      _
    // Predicated region
    $region34: #{deep_layer_forward.1} parent=1 // pred_check
      _
    $region35: #{deep_layer_forward.1} parent=1 // pred_check_branch
      %351 = sbr.rel (0) target = $region37
    $region36: #{deep_layer_forward.1} parent=1 // pred_region
      %352 = dma.done [#allocation3], 256
    $region37: #{deep_layer_forward.1} parent=1 // pred_fallthru
      _
    %353 = vsyncpa [#allocation3], 1

</llo_original>
